<compile_context>
chip_gen: v7x
topology: tpu7x:2x2x1
jax: 0.10.0
libtpu: 0.0.40
codegen_flags: <defaults>
</compile_context>

<pallas_src>
import functools

import jax
import jax.numpy as jnp
import numpy as np
from jax.experimental import pallas as pl
from jax.experimental.pallas import tpu as pltpu

PROJ_DIM = 128
LOGIT_SCALE = float(np.log(1.0 / 0.07))


def clip_kernel(xy_ref, w_ref, by_ref, out_ref, *, dx, dy):
    xy = xy_ref[...]          # [B, Dx+Dy+1]  = [x | y | 1], f32
    w = w_ref[...]            # [Dx+Dy+1, 2*PROJ_DIM]  blockdiag(Wx, Wy) + bx row
    by = by_ref[...]          # [1, PROJ_DIM]

    # Recover 1/||y|| from the y columns of the fused input: masked lane
    # reduce on data already resident in a vreg (no separate y DMA).  rsqrt
    # goes to the EUP; the rescale is a VPU multiply.
    col_ids = jax.lax.broadcasted_iota(jnp.int32, xy.shape, 1)
    y_mask = (col_ids >= dx) & (col_ids < dx + dy)
    ysq = jnp.where(y_mask, xy * xy, 0.0)
    inv_ny = jax.lax.rsqrt(jnp.sum(ysq, axis=1, keepdims=True))       # [B, 1]

    # Single fused MXU pass for both projections; the ones column adds bx to
    # the x half (the by half of the bias row is zero).
    proj = jnp.dot(xy, w, preferred_element_type=jnp.float32)         # [B, 256]

    xp = proj[:, :PROJ_DIM]                                           # x @ Wx + bx
    # (s*y) @ Wy == s * (y @ Wy): rescale after the dot, then add by.
    yp = inv_ny * proj[:, PROJ_DIM:] + by                             # [B, 128]

    # Normalize the projected x rows.
    inv_nx = jax.lax.rsqrt(jnp.sum(xp * xp, axis=1, keepdims=True))   # [B, 1]
    xn = xp * inv_nx

    # Similarity logits: contract the feature dim of both operands directly
    # (no explicit transpose of yp through the XLU).
    logits = LOGIT_SCALE * jax.lax.dot_general(
        xn, yp, (((1,), (1,)), ((), ())),
        preferred_element_type=jnp.float32)                           # [B, B]

    # Diagonal of logits, computed once, lane-dense (identical for logits.T).
    diag = LOGIT_SCALE * jnp.sum(xn * yp, axis=1, keepdims=True)      # [B, 1]

    # Shared exp tile for the row-wise AND column-wise logsumexp (global-max
    # shift; safe at CLIP-scale logit ranges — switch to per-row/per-column
    # maxes if extreme dynamic range is ever expected).
    m = jnp.max(logits)
    e = jnp.exp(logits - m)
    lse_rows = m + jnp.log(jnp.sum(e, axis=1, keepdims=True))         # [B, 1]
    lse_cols = m + jnp.log(jnp.sum(e, axis=0, keepdims=True))         # [1, B]

    batch = logits.shape[0]
    # 0.5 * (mean(lse_rows - diag) + mean(lse_cols - diag))
    loss = (jnp.sum(lse_rows) + jnp.sum(lse_cols)
            - 2.0 * jnp.sum(diag)) / (2.0 * batch)
    out_ref[0, 0] = loss


@jax.jit
def clip_forward(x, y, wx_t, bx, wy_t, by):
    """x: [B, x_size], y: [B, y_size].
    Weights are pre-transposed to [in_features, out_features]."""
    B, Dx = x.shape
    _, Dy = y.shape
    K = Dx + Dy + 1  # [x | y | 1]

    # Fused weight: blockdiag(Wx, Wy) with a bias row that carries bx only
    # (by must stay a post-rescale add inside the kernel).  These depend on
    # runtime weights, so they are rebuilt each call — under jit they become
    # cheap fused XLA pad/copy ops overlapping the pallas_call.
    w_cat = jnp.zeros((K, 2 * PROJ_DIM), jnp.float32)
    w_cat = w_cat.at[:Dx, :PROJ_DIM].set(wx_t)
    w_cat = w_cat.at[Dx:Dx + Dy, PROJ_DIM:].set(wy_t)
    w_cat = w_cat.at[Dx + Dy, :PROJ_DIM].set(bx)
    xy1 = jnp.concatenate([x, y, jnp.ones((B, 1), x.dtype)], axis=1)  # [B, K]
    by2 = by.reshape(1, PROJ_DIM)

    full = lambda shape: pl.BlockSpec(shape, lambda: tuple(0 for _ in shape))

    out = pl.pallas_call(
        functools.partial(clip_kernel, dx=Dx, dy=Dy),
        out_shape=jax.ShapeDtypeStruct((1, 1), jnp.float32),
        in_specs=[
            full((B, K)),
            full((K, 2 * PROJ_DIM)),
            full((1, PROJ_DIM)),
        ],
        out_specs=pl.BlockSpec(memory_space=pltpu.SMEM),
    )(xy1, w_cat, by2)
    return out[0, 0]


def _reference(x, y, wx_t, bx, wy_t, by):
    xp = x @ wx_t + bx
    xn = xp / jnp.linalg.norm(xp, axis=1, keepdims=True)
    yn = y / jnp.linalg.norm(y, axis=1, keepdims=True)
    yp = yn @ wy_t + by
    logits = LOGIT_SCALE * (xn @ yp.T)

    def ce(lg):
        lse = jax.scipy.special.logsumexp(lg, axis=1)
        return jnp.mean(lse - jnp.diag(lg))

    return (ce(logits) + ce(logits.T)) / 2.0


if __name__ == "__main__":
    B, x_size, y_size = 8, 32, 16

    key = jax.random.PRNGKey(0)
    kx, ky, kwx, kbx, kwy, kby = jax.random.split(key, 6)

    x = jax.random.normal(kx, (B, x_size), dtype=jnp.float32)
    y = jax.random.normal(ky, (B, y_size), dtype=jnp.float32)

    # Deterministic parameter init mimicking torch.nn.Linear (uniform +-1/sqrt(in)).
    bound_x = 1.0 / np.sqrt(x_size)
    bound_y = 1.0 / np.sqrt(y_size)
    # Weights stored pre-transposed: [in_features, out_features].
    wx_t = jax.random.uniform(kwx, (x_size, PROJ_DIM), jnp.float32, -bound_x, bound_x)
    bx = jax.random.uniform(kbx, (PROJ_DIM,), jnp.float32, -bound_x, bound_x)
    wy_t = jax.random.uniform(kwy, (y_size, PROJ_DIM), jnp.float32, -bound_y, bound_y)
    by = jax.random.uniform(kby, (PROJ_DIM,), jnp.float32, -bound_y, bound_y)

    loss = clip_forward(x, y, wx_t, bx, wy_t, by)
    loss = jax.block_until_ready(loss)

    ref = _reference(x, y, wx_t, bx, wy_t, by)
    np.testing.assert_allclose(np.asarray(loss), np.asarray(ref), rtol=1e-5, atol=1e-5)

    print("KERNEL_OK")
</pallas_src>

<mosaic_0001>
module attributes {stable_mosaic.version = 11 : i64} {
  func.func @clip_kernel(%arg0: memref<8x49xf32, #tpu.memory_space<vmem>>, %arg1: memref<49x256xf32, #tpu.memory_space<vmem>>, %arg2: memref<1x128xf32, #tpu.memory_space<vmem>>, %arg3: memref<1x1xf32, #tpu.memory_space<smem>>) attributes {dimension_semantics = [], scalar_prefetch = 0 : i64, scratch_operands = 0 : i64, tpu.core_type = #tpu.core_type<tc>} {
    %c0 = arith.constant 0 : index
    %c0_0 = arith.constant 0 : index
    %0 = vector.load %arg0[%c0, %c0_0] : memref<8x49xf32, #tpu.memory_space<vmem>>, vector<8x49xf32>
    %c0_1 = arith.constant 0 : index
    %c0_2 = arith.constant 0 : index
    %1 = vector.load %arg1[%c0_1, %c0_2] : memref<49x256xf32, #tpu.memory_space<vmem>>, vector<49x256xf32>
    %c0_3 = arith.constant 0 : index
    %c0_4 = arith.constant 0 : index
    %2 = vector.load %arg2[%c0_3, %c0_4] : memref<1x128xf32, #tpu.memory_space<vmem>>, vector<1x128xf32>
    %3 = tpu.iota {dimensions = array<i32: 1>} : vector<8x49xi32>
    %c32_i32 = arith.constant 32 : i32
    %4 = vector.broadcast %c32_i32 : i32 to vector<8x49xi32>
    %5 = arith.cmpi sge, %3, %4 : vector<8x49xi32>
    %c48_i32 = arith.constant 48 : i32
    %6 = vector.broadcast %c48_i32 : i32 to vector<8x49xi32>
    %7 = arith.cmpi slt, %3, %6 : vector<8x49xi32>
    %8 = arith.andi %5, %7 : vector<8x49xi1>
    %9 = arith.mulf %0, %0 : vector<8x49xf32>
    %cst = arith.constant 0.000000e+00 : f32
    %10 = vector.broadcast %cst : f32 to vector<8x49xf32>
    %11 = arith.select %8, %9, %10 : vector<8x49xi1>, vector<8x49xf32>
    %cst_5 = arith.constant dense<0.000000e+00> : vector<8xf32>
    %12 = vector.multi_reduction <add>, %11, %cst_5 [1] : vector<8x49xf32> to vector<8xf32>
    %13 = vector.shape_cast %12 : vector<8xf32> to vector<8x1xf32>
    %14 = math.rsqrt %13 : vector<8x1xf32>
    %cst_6 = arith.constant dense<0.000000e+00> : vector<8x256xf32>
    %15 = tpu.matmul %0, %1, %cst_6 {dimension_numbers = #tpu.dot_dimension_numbers<[1], [0], [0], [1], [0, 0, 1, 1], [], []>} : vector<8x49xf32>, vector<49x256xf32>, vector<8x256xf32> -> vector<8x256xf32>
    %16 = vector.extract_strided_slice %15 {offsets = [0, 0], sizes = [8, 128], strides = [1, 1]} : vector<8x256xf32> to vector<8x128xf32>
    %17 = vector.extract_strided_slice %15 {offsets = [0, 128], sizes = [8, 128], strides = [1, 1]} : vector<8x256xf32> to vector<8x128xf32>
    %18 = vector.broadcast %14 : vector<8x1xf32> to vector<8x128xf32>
    %19 = arith.mulf %18, %17 : vector<8x128xf32>
    %20 = vector.broadcast %2 : vector<1x128xf32> to vector<8x128xf32>
    %21 = arith.addf %19, %20 : vector<8x128xf32>
    %22 = arith.mulf %16, %16 : vector<8x128xf32>
    %cst_7 = arith.constant dense<0.000000e+00> : vector<8xf32>
    %23 = vector.multi_reduction <add>, %22, %cst_7 [1] : vector<8x128xf32> to vector<8xf32>
    %24 = vector.shape_cast %23 : vector<8xf32> to vector<8x1xf32>
    %25 = math.rsqrt %24 : vector<8x1xf32>
    %26 = vector.broadcast %25 : vector<8x1xf32> to vector<8x128xf32>
    %27 = arith.mulf %16, %26 : vector<8x128xf32>
    %cst_8 = arith.constant dense<0.000000e+00> : vector<8x8xf32>
    %28 = tpu.matmul %27, %21, %cst_8 {dimension_numbers = #tpu.dot_dimension_numbers<[1], [1], [0], [0], [0, 0, 1, 0], [], []>} : vector<8x128xf32>, vector<8x128xf32>, vector<8x8xf32> -> vector<8x8xf32>
    %cst_9 = arith.constant 2.659260e+00 : f32
    %29 = vector.broadcast %cst_9 : f32 to vector<8x8xf32>
    %30 = arith.mulf %29, %28 : vector<8x8xf32>
    %31 = arith.mulf %27, %21 : vector<8x128xf32>
    %cst_10 = arith.constant dense<0.000000e+00> : vector<8xf32>
    %32 = vector.multi_reduction <add>, %31, %cst_10 [1] : vector<8x128xf32> to vector<8xf32>
    %33 = vector.shape_cast %32 : vector<8xf32> to vector<8x1xf32>
    %cst_11 = arith.constant 2.659260e+00 : f32
    %34 = vector.broadcast %cst_11 : f32 to vector<8x1xf32>
    %35 = arith.mulf %34, %33 : vector<8x1xf32>
    %36 = vector.shape_cast %30 : vector<8x8xf32> to vector<1x8x8xf32>
    %cst_12 = arith.constant dense<0xFF800000> : vector<1xf32>
    %37 = vector.multi_reduction <maximumf>, %36, %cst_12 [1, 2] : vector<1x8x8xf32> to vector<1xf32>
    %38 = vector.shape_cast %37 : vector<1xf32> to vector<1x1x1xf32>
    %39 = vector.extract %38[0, 0, 0] : f32 from vector<1x1x1xf32>
    %40 = vector.broadcast %39 : f32 to vector<8x8xf32>
    %41 = arith.subf %30, %40 : vector<8x8xf32>
    %42 = math.exp %41 : vector<8x8xf32>
    %cst_13 = arith.constant dense<0.000000e+00> : vector<8xf32>
    %43 = vector.multi_reduction <add>, %42, %cst_13 [1] : vector<8x8xf32> to vector<8xf32>
    %44 = vector.shape_cast %43 : vector<8xf32> to vector<8x1xf32>
    %45 = math.log %44 : vector<8x1xf32>
    %46 = vector.broadcast %39 : f32 to vector<8x1xf32>
    %47 = arith.addf %46, %45 : vector<8x1xf32>
    %cst_14 = arith.constant dense<0.000000e+00> : vector<8xf32>
    %48 = vector.multi_reduction <add>, %42, %cst_14 [0] : vector<8x8xf32> to vector<8xf32>
    %49 = vector.shape_cast %48 : vector<8xf32> to vector<1x8xf32>
    %50 = math.log %49 : vector<1x8xf32>
    %51 = vector.broadcast %39 : f32 to vector<1x8xf32>
    %52 = arith.addf %51, %50 : vector<1x8xf32>
    %53 = vector.shape_cast %47 : vector<8x1xf32> to vector<1x8x1xf32>
    %cst_15 = arith.constant dense<0.000000e+00> : vector<1xf32>
    %54 = vector.multi_reduction <add>, %53, %cst_15 [1, 2] : vector<1x8x1xf32> to vector<1xf32>
    %55 = vector.shape_cast %54 : vector<1xf32> to vector<1x1x1xf32>
    %56 = vector.extract %55[0, 0, 0] : f32 from vector<1x1x1xf32>
    %57 = vector.shape_cast %52 : vector<1x8xf32> to vector<1x1x8xf32>
    %cst_16 = arith.constant dense<0.000000e+00> : vector<1xf32>
    %58 = vector.multi_reduction <add>, %57, %cst_16 [1, 2] : vector<1x1x8xf32> to vector<1xf32>
    %59 = vector.shape_cast %58 : vector<1xf32> to vector<1x1x1xf32>
    %60 = vector.extract %59[0, 0, 0] : f32 from vector<1x1x1xf32>
    %61 = arith.addf %56, %60 : f32
    %62 = vector.shape_cast %35 : vector<8x1xf32> to vector<1x8x1xf32>
    %cst_17 = arith.constant dense<0.000000e+00> : vector<1xf32>
    %63 = vector.multi_reduction <add>, %62, %cst_17 [1, 2] : vector<1x8x1xf32> to vector<1xf32>
    %64 = vector.shape_cast %63 : vector<1xf32> to vector<1x1x1xf32>
    %65 = vector.extract %64[0, 0, 0] : f32 from vector<1x1x1xf32>
    %cst_18 = arith.constant 2.000000e+00 : f32
    %66 = arith.mulf %cst_18, %65 : f32
    %67 = arith.subf %61, %66 : f32
    %cst_19 = arith.constant 1.600000e+01 : f32
    %68 = arith.divf %67, %cst_19 : f32
    %c0_20 = arith.constant 0 : index
    %c0_21 = arith.constant 0 : index
    %69 = memref.load %arg3[%c0_20, %c0_21] : memref<1x1xf32, #tpu.memory_space<smem>>
    memref.store %68, %arg3[%c0_20, %c0_21] : memref<1x1xf32, #tpu.memory_space<smem>>
    return
  }
}

</mosaic_0001>

<llo_original>
// kernel: clip_forward.1
$region0: #{clip_forward.1}
  #allocation0 [shape = 'u32[]', space=smem, size = 0x4, offset = 0x4, fixed_abs, tag = 'smem constant byte address 0x4 - core index']
  #allocation1 [shape = 'u32[144,128]{1,0:T(1,128)}', space=vmem, size = 0x12000, scoped, tag = 'internal scratch']
  %s0 = inlined_call_operand.vmem [shape: f32[8,49], index: 0, kind: input, shape index: {}]
  %s1 = inlined_call_operand.vmem [shape: f32[49,256], index: 1, kind: input, shape index: {}]
  %s2 = inlined_call_operand.vmem [shape: f32[1,128], index: 2, kind: input, shape index: {}]
  %s3 = inlined_call_operand.hbm [shape: f32[1,1], index: 3, kind: output, shape index: {}]
  %s4 = sld [smem:[#allocation0]]
  $region22: #{clip_forward.1} parent=0
    _
  %s6 = ssub.s32 1, %s4
  %s7 = scalar_select 0, %s6, %s4
  $region1: #{clip_forward.1} parent=0
    #allocation2 [shape = 'u8[512]{0}', space=smem, size = 0x200, scoped, tag = 'output window, operand 0, single buffered']
    #allocation3 [shape = 's32[1]{0}', space=sflag, size = 0x4, scoped, tag = 'scoped memory for clip_forward.1']
    %8 = vsyncpa [#allocation3], 0
    // Predicated region
    $region2: #{clip_forward.1} parent=1 // pred_check
      _
    $region3: #{clip_forward.1} parent=1 // pred_check_branch
      %10 = sbr.rel (0) target = $region5
    $region4: #{clip_forward.1} parent=1 // pred_region
      _
    $region5: #{clip_forward.1} parent=1 // pred_fallthru
      _
    // Predicated region
    $region6: #{clip_forward.1} parent=1 // pred_check
      _
    $region7: #{clip_forward.1} parent=1 // pred_check_branch
      %12 = sbr.rel (0) target = $region9
    $region8: #{clip_forward.1} parent=1 // pred_region
      _
    $region9: #{clip_forward.1} parent=1 // pred_fallthru
      _
    // Predicated region
    $region10: #{clip_forward.1} parent=1 // pred_check
      _
    $region11: #{clip_forward.1} parent=1 // pred_check_branch
      %14 = sbr.rel (0) target = $region13
    $region12: #{clip_forward.1} parent=1 // pred_region
      _
    $region13: #{clip_forward.1} parent=1 // pred_fallthru
      _
    %v15 = vld [vmem:[%s0] sm:$0xff]
    %v16 = vld [vmem:[%s1] sm:$0xff]
    %v17 = vld [vmem:[%s1 + $0x8] sm:$0xff]
    %v18 = vld [vmem:[%s1 + $0x10] sm:$0xff]
    %v19 = vld [vmem:[%s1 + $0x18] sm:$0xff]
    %v20 = vld [vmem:[%s1 + $0x20] sm:$0xff]
    %v21 = vld [vmem:[%s1 + $0x28] sm:$0xff]
    %v22 = vld [vmem:[%s1 + $0x30] sm:$0xff]
    %v23 = vld [vmem:[%s1 + $0x38] sm:$0xff]
    %v24 = vld [vmem:[%s1 + $0x40] sm:$0xff]
    %v25 = vld [vmem:[%s1 + $0x48] sm:$0xff]
    %v26 = vld [vmem:[%s1 + $0x50] sm:$0xff]
    %v27 = vld [vmem:[%s1 + $0x58] sm:$0xff]
    %v28 = vld [vmem:[%s1 + $0x60] sm:$0x1]
    %v29 = vld [vmem:[%s1 + $0x68] sm:$0x1]
    %v30 = vld [vmem:[%s2] sm:$0x1]
    %v31 = vlaneseq
    %v32 = vand.u32 %v31, 127
    %vm33 = vcmp.ge.s32.totalorder %v32, 32
    %vm34 = vcmp.lt.s32.totalorder %v32, 48
    %vm35 = vmand %vm33, %vm34
    %v36 = vmul.f32 %v15, %v15
    %v37 = vsel %vm35, %v36, 0.0
    %vm38 = vcmask 400384
    %v39 = vsel %vm38, %v37, 0.0
    %40 = vadd.xlane.f32.xlu0 %v39
    %v41 = vpop.xlane.xlu0 %40
    %v42 = vrsqrt.pop %v41
    %v44 = vsel %vm38, %v15, 0
    %vm46 = vcmask 1040384
    %v48 = vsel %vm46, %v28, 0
    %v51 = vsel %vm46, %v29, 0
    %53 = vmatprep.subr.mxu0 %v17
    %54 = vmatpush1.msra.mxu0 %v16
    %55 = vmatprep.subr.mxu0 %v19
    %56 = vmatpush1.msra.mxu0 %v18
    %57 = vmatprep.subr.mxu0 %v21
    %58 = vmatpush1.msra.mxu0 %v20
    %59 = vmatprep.subr.mxu0 %v23
    %60 = vmatpush1.msra.mxu0 %v22
    %61 = vmatprep.subr.mxu0 %v25
    %62 = vmatpush1.msra.mxu0 %v24
    %63 = vmatprep.subr.mxu0 %v27
    %64 = vmatpush1.msra.mxu0 %v26
    %65 = vmatprep.subr.mxu0 %v51
    %66 = vmatpush1.msra.mxu0 %v48
    %67 = vmatprep.subr.mxu0 0.0
    %68 = vmatpush1.msra.mxu0 0.0
    %69 = vmatprep.subr.mxu0 0.0
    %70 = vmatpush1.msra.mxu0 0.0
    %71 = vmatprep.subr.mxu0 0.0
    %72 = vmatpush1.msra.mxu0 0.0
    %73 = vmatprep.subr.mxu0 0.0
    %74 = vmatpush1.msra.mxu0 0.0
    %75 = vmatprep.subr.mxu0 0.0
    %76 = vmatpush1.msra.mxu0 0.0
    %77 = vmatprep.subr.mxu0 0.0
    %78 = vmatpush1.msra.mxu0 0.0
    %79 = vmatprep.subr.mxu0 0.0
    %80 = vmatpush1.msra.mxu0 0.0
    %81 = vmatprep.subr.mxu0 0.0
    %82 = vmatpush1.msra.mxu0 0.0
    %83 = vmatprep.subr.mxu0 0.0
    %84 = vmatpush1.msra.mxu0 0.0
    %85 = vmatprep.subr.mxu0 0.0
    %86 = vmatpush1.msra.mxu0 0.0
    %87 = vmatprep.subr.mxu0 0.0
    %88 = vmatpush1.msra.mxu0 0.0
    %89 = vmatprep.subr.mxu0 0.0
    %90 = vmatpush1.msra.mxu0 0.0
    %91 = vmatprep.subr.mxu0 0.0
    %92 = vmatpush1.msra.mxu0 0.0
    %93 = vmatprep.subr.mxu0 0.0
    %94 = vmatpush1.msra.mxu0 0.0
    %95 = vmatprep.subr.mxu0 0.0
    %96 = vmatpush1.msra.mxu0 0.0
    %97 = vmatprep.subr.mxu0 0.0
    %98 = vmatpush1.msra.mxu0 0.0
    %99 = vmatprep.subr.mxu0 0.0
    %100 = vmatpush1.msra.mxu0 0.0
    %101 = vmatprep.subr.mxu0 0.0
    %102 = vmatpush1.msra.mxu0 0.0
    %103 = vmatprep.subr.mxu0 0.0
    %104 = vmatpush1.msra.mxu0 0.0
    %105 = vmatprep.subr.mxu0 0.0
    %106 = vmatpush1.msra.mxu0 0.0
    %107 = vmatprep.subr.mxu0 0.0
    %108 = vmatpush1.msra.mxu0 0.0
    %109 = vmatprep.subr.mxu0 0.0
    %110 = vmatpush1.msra.mxu0 0.0
    %111 = vmatprep.subr.mxu0 0.0
    %112 = vmatpush1.msra.mxu0 0.0
    %113 = vmatprep.subr.mxu0 0.0
    %114 = vmatpush1.msra.mxu0 0.0
    %115 = vmatprep.subr.mxu0 0.0
    %116 = vmatpush1.msra.mxu0 0.0
    %117 = vmatprep.mubr.f32.mxu0 0.0
    %118 = vmatmul.mubr.f32.gmra.mrb[0].mxu0 %v44
    %v119 = vpop.f32.mrb[0].mxu0
    %v120 = vadd.f32 0.0, %v119
    %v121 = vpop.f32.mrb[0].mxu0
    %v122 = vadd.f32 0.0, %v121
    %123 = vdwg.mxu0
    %v124 = vmul.f32 %v42, %v122
    %v126 = vlaneseq
    %v127 = vshrl.u32 %v126, 7
    %v128 = vsub.s32 0, %v127
    %v129 = vrot.slane %v30, %v128
    %v131 = vadd.f32 %v124, %v129
    %v132 = vmul.f32 %v120, %v120
    %133 = vadd.xlane.f32.xlu0 %v132
    %v134 = vpop.xlane.xlu0 %133
    %v135 = vrsqrt.pop %v134
    %v136 = vmul.f32 %v120, %v135
    %137 = vmatprep.subr.mxu0 0.0
    %138 = vmatpush1.xpose.msra.mxu0 %v131
    %139 = vmatprep.subr.mxu0 0.0
    %140 = vmatpush1.xpose.msra.mxu0 0.0
    %141 = vmatprep.subr.mxu0 0.0
    %142 = vmatpush1.xpose.msra.mxu0 0.0
    %143 = vmatprep.subr.mxu0 0.0
    %144 = vmatpush1.xpose.msra.mxu0 0.0
    %145 = vmatprep.subr.mxu0 0.0
    %146 = vmatpush1.xpose.msra.mxu0 0.0
    %147 = vmatprep.subr.mxu0 0.0
    %148 = vmatpush1.xpose.msra.mxu0 0.0
    %149 = vmatprep.subr.mxu0 0.0
    %150 = vmatpush1.xpose.msra.mxu0 0.0
    %151 = vmatprep.subr.mxu0 0.0
    %152 = vmatpush1.xpose.msra.mxu0 0.0
    %153 = vmatprep.subr.mxu0 0.0
    %154 = vmatpush1.xpose.msra.mxu0 0.0
    %155 = vmatprep.subr.mxu0 0.0
    %156 = vmatpush1.xpose.msra.mxu0 0.0
    %157 = vmatprep.subr.mxu0 0.0
    %158 = vmatpush1.xpose.msra.mxu0 0.0
    %159 = vmatprep.subr.mxu0 0.0
    %160 = vmatpush1.xpose.msra.mxu0 0.0
    %161 = vmatprep.subr.mxu0 0.0
    %162 = vmatpush1.xpose.msra.mxu0 0.0
    %163 = vmatprep.subr.mxu0 0.0
    %164 = vmatpush1.xpose.msra.mxu0 0.0
    %165 = vmatprep.subr.mxu0 0.0
    %166 = vmatpush1.xpose.msra.mxu0 0.0
    %167 = vmatprep.subr.mxu0 0.0
    %168 = vmatpush1.xpose.msra.mxu0 0.0
    %169 = vmatprep.subr.mxu0 0.0
    %170 = vmatpush1.xpose.msra.mxu0 0.0
    %171 = vmatprep.subr.mxu0 0.0
    %172 = vmatpush1.xpose.msra.mxu0 0.0
    %173 = vmatprep.subr.mxu0 0.0
    %174 = vmatpush1.xpose.msra.mxu0 0.0
    %175 = vmatprep.subr.mxu0 0.0
    %176 = vmatpush1.xpose.msra.mxu0 0.0
    %177 = vmatprep.subr.mxu0 0.0
    %178 = vmatpush1.xpose.msra.mxu0 0.0
    %179 = vmatprep.subr.mxu0 0.0
    %180 = vmatpush1.xpose.msra.mxu0 0.0
    %181 = vmatprep.subr.mxu0 0.0
    %182 = vmatpush1.xpose.msra.mxu0 0.0
    %183 = vmatprep.subr.mxu0 0.0
    %184 = vmatpush1.xpose.msra.mxu0 0.0
    %185 = vmatprep.subr.mxu0 0.0
    %186 = vmatpush1.xpose.msra.mxu0 0.0
    %187 = vmatprep.subr.mxu0 0.0
    %188 = vmatpush1.xpose.msra.mxu0 0.0
    %189 = vmatprep.subr.mxu0 0.0
    %190 = vmatpush1.xpose.msra.mxu0 0.0
    %191 = vmatprep.subr.mxu0 0.0
    %192 = vmatpush1.xpose.msra.mxu0 0.0
    %193 = vmatprep.subr.mxu0 0.0
    %194 = vmatpush1.xpose.msra.mxu0 0.0
    %195 = vmatprep.subr.mxu0 0.0
    %196 = vmatpush1.xpose.msra.mxu0 0.0
    %197 = vmatprep.subr.mxu0 0.0
    %198 = vmatpush1.xpose.msra.mxu0 0.0
    %199 = vmatprep.subr.mxu0 0.0
    %200 = vmatpush1.xpose.msra.mxu0 0.0
    %201 = vmatprep.mubr.f32.mxu0 0.0
    %202 = vmatmul.mubr.f32.gmra.mrb[0].mxu0 %v136
    %v203 = vpop.f32.mrb[0].mxu0
    %v204 = vadd.f32 0.0, %v203
    %v205 = vpop.f32.mrb[0].mxu0
    %206 = vdwg.mxu0
    %v207 = vmul.f32 %v204, 2.65926
    %v208 = vmul.f32 %v136, %v131
    %209 = vadd.xlane.f32.xlu0 %v208
    %v210 = vpop.xlane.xlu0 %209
    %v211 = vmul.f32 %v210, 2.65926
    %vm212 = vcmask 64512
    %v213 = vsel %vm212, %v207, -inf
    %214 = vmax.xlane.f32.xlu0 %v213
    %v215 = vpop.xlane.xlu0 %214
    %v216 = vrot.slane %v215, 4
    %v217 = vmax.f32 %v215, %v216
    %v218 = vrot.slane %v217, 2
    %v219 = vmax.f32 %v217, %v218
    %v220 = vrot.slane %v219, 1
    %v221 = vmax.f32 %v219, %v220
    %s222 = vtos %v221
    %v223 = vstv %s222
    %v224 = vsub.f32 %v207, %v223
    %v225 = vmul.f32 %v224, 1.442695
    %v226 = vpow.pop %v225
    %v227 = vsel %vm212, %v226, 0.0
    %228 = vadd.xlane.f32.xlu0 %v227
    %v229 = vpop.xlane.xlu0 %228
    %v230 = vlog2.pop %v229
    %v231 = vmul.f32 %v230, 0.6931472
    %v232 = vadd.f32 %v223, %v231
    %v233 = vrot.slane %v227, 4
    %v234 = vadd.f32 %v227, %v233
    %v235 = vrot.slane %v234, 2
    %v236 = vadd.f32 %v234, %v235
    %v237 = vrot.slane %v236, 1
    %v238 = vadd.f32 %v236, %v237
    %v239 = vlog2.pop %v238
    %v240 = vmul.f32 %v239, 0.6931472
    %v241 = vadd.f32 %v223, %v240
    %vm242 = vcmask 7168
    %v243 = vsel %vm242, %v232, 0.0
    %244 = vadd.xlane.f32.xlu0 %v243
    %v245 = vpop.xlane.xlu0 %244
    %v246 = vrot.slane %v245, 4
    %v247 = vadd.f32 %v245, %v246
    %v248 = vrot.slane %v247, 2
    %v249 = vadd.f32 %v247, %v248
    %v250 = vrot.slane %v249, 1
    %v251 = vadd.f32 %v249, %v250
    %s252 = vtos %v251
    %vm253 = vcmask 57344
    %v254 = vsel %vm253, %v241, 0.0
    %255 = vadd.xlane.f32.xlu0 %v254
    %v256 = vpop.xlane.xlu0 %255
    %v257 = vrot.slane %v256, 4
    %v258 = vadd.f32 %v256, %v257
    %v259 = vrot.slane %v258, 2
    %v260 = vadd.f32 %v258, %v259
    %v261 = vrot.slane %v260, 1
    %v262 = vadd.f32 %v260, %v261
    %s263 = vtos %v262
    %s264 = sadd.f32 %s252, %s263
    %v265 = vsel %vm242, %v211, 0.0
    %266 = vadd.xlane.f32.xlu0 %v265
    %v267 = vpop.xlane.xlu0 %266
    %v268 = vrot.slane %v267, 4
    %v269 = vadd.f32 %v267, %v268
    %v270 = vrot.slane %v269, 2
    %v271 = vadd.f32 %v269, %v270
    %v272 = vrot.slane %v271, 1
    %v273 = vadd.f32 %v271, %v272
    %s274 = vtos %v273
    %s275 = smul.f32 %s274, 2.0
    %s276 = ssub.f32 %s264, %s275
    %v277 = vrcp.pop 16.0
    %s278 = vtos %v277
    %s279 = smul.f32 %s276, %s278
    %s280 = scalar_lea.smem [#allocation2], 0
    %281 = sst [smem:[%s280]] %s279
    // Predicated region
    $region14: #{clip_forward.1} parent=1 // pred_check
      _
    $region15: #{clip_forward.1} parent=1 // pred_check_branch
      %283 = sbr.rel (0) target = $region17
    $region16: #{clip_forward.1} parent=1 // pred_region
      %s285 = ssub.s32 16, 16
      %286 = vsyncadd [#allocation3], %s285
      %289 = dma.smem_to_hbm [#allocation2], 16, %s3, [#allocation3]
    $region17: #{clip_forward.1} parent=1 // pred_fallthru
      _
    // Predicated region
    $region18: #{clip_forward.1} parent=1 // pred_check
      _
    $region19: #{clip_forward.1} parent=1 // pred_check_branch
      %291 = sbr.rel (0) target = $region21
    $region20: #{clip_forward.1} parent=1 // pred_region
      %292 = dma.done [#allocation3], 16
    $region21: #{clip_forward.1} parent=1 // pred_fallthru
      _
    %293 = sfence
    %294 = vsyncpa [#allocation3], 1

</llo_original>
